<compile_context>
chip_gen: v7x
topology: tpu7x:2x2x1
jax: 0.10.0
libtpu: 0.0.40
codegen_flags: <defaults>
</compile_context>

<pallas_src>
import jax
import jax.numpy as jnp
from jax import lax
from jax.experimental import pallas as pl
from jax.experimental.pallas import tpu as pltpu

# ---- problem sizes (small, consistent with the module) ----
N = 2          # batch
C_IN = 3       # conv in_channels
C_OUT = 32     # conv out_channels
KH, KW = 3, 3  # kernel size
H, W = 16, 16  # spatial input
H_OUT = H - KH + 1       # 14 (stride 1, padding 0)
W_OUT = W - KW + 1       # 14
K_FLAT = C_IN * KH * KW  # 27


def conv_mean_kernel(x_ref, w_ref, o_ref):
    """Single invocation over the whole (tiny) problem.

    x_ref: (N, C_IN, H, W)        VMEM
    w_ref: (C_OUT, K_FLAT)        VMEM; column order (kw, kh, ci), 1/H_OUT folded in
    o_ref: (N, C_OUT, W_OUT)      VMEM; final layout, no wrapper reshape needed
    """
    x = x_ref[...]
    w = w_ref[...]

    # One full column sum over H per (n, ci); the three kh-shifted window sums
    # (each over H_OUT rows) follow by subtracting edge rows.
    full = jnp.sum(x, axis=2)            # (N, C_IN, W)
    r0 = x[:, :, 0, :]                   # row 0
    r1 = x[:, :, 1, :]                   # row 1
    ra = x[:, :, H - 2, :]               # row H-2
    rb = x[:, :, H - 1, :]               # row H-1
    s0 = full - ra - rb                  # kh = 0: rows 0 .. H_OUT-1
    s1 = full - r0 - rb                  # kh = 1: rows 1 .. H_OUT
    s2 = full - r0 - r1                  # kh = 2: rows 2 .. H_OUT+1

    # Stack once: (N, KH*C_IN, W), row index = kh*C_IN + ci.
    s_all = jnp.concatenate([s0, s1, s2], axis=1)

    # kw-major R: only KW=3 lane-shifted slices, concatenated as 9-row blocks.
    # Row index = kw*(KH*C_IN) + kh*C_IN + ci  (matches prepare_weight order).
    r_all = jnp.concatenate(
        [s_all[:, :, kw:kw + W_OUT] for kw in range(KW)], axis=1
    )                                    # (N, K_FLAT, W_OUT)

    # One tiny MXU matmul per batch element; write output in its final layout.
    for n in range(N):
        o_ref[n] = jnp.dot(
            w, r_all[n], preferred_element_type=jnp.float32
        ).astype(o_ref.dtype)


def prepare_weight(weight):
    """(C_OUT, C_IN, KH, KW) -> (C_OUT, K_FLAT) in (kw, kh, ci)-major column
    order with the 1/H_OUT mean factor folded in.  Static parameter prep:
    call once, not per forward."""
    assert weight.shape == (C_OUT, C_IN, KH, KW), weight.shape
    w_perm = jnp.transpose(weight, (0, 3, 2, 1)).reshape(C_OUT, K_FLAT)
    return w_perm * jnp.float32(1.0 / H_OUT)


def conv_mean(x, w_prep):
    """x: (N, C_IN, H, W) f32; w_prep: output of prepare_weight.

    Returns (N, C_OUT, W_OUT) f32 == torch.mean(conv2d(x, weight), dim=2).
    """
    assert x.shape == (N, C_IN, H, W), x.shape
    assert w_prep.shape == (C_OUT, K_FLAT), w_prep.shape

    return pl.pallas_call(
        conv_mean_kernel,
        out_shape=jax.ShapeDtypeStruct((N, C_OUT, W_OUT), jnp.float32),
        in_specs=[
            pl.BlockSpec(memory_space=pltpu.MemorySpace.VMEM),
            pl.BlockSpec(memory_space=pltpu.MemorySpace.VMEM),
        ],
        out_specs=pl.BlockSpec(memory_space=pltpu.MemorySpace.VMEM),
    )(x, w_prep)


def reference(x, weight):
    """Plain-JAX reference: conv2d (VALID, stride 1) then mean over H_out."""
    y = lax.conv_general_dilated(
        x, weight,
        window_strides=(1, 1),
        padding="VALID",
        dimension_numbers=("NCHW", "OIHW", "NCHW"),
    )
    return jnp.mean(y, axis=2)


if __name__ == "__main__":
    key = jax.random.PRNGKey(0)
    kx, kw = jax.random.split(key)

    x = jax.random.normal(kx, (N, C_IN, H, W), dtype=jnp.float32)
    # deterministic synthetic conv weight (no bias, matching the module)
    weight = jax.random.normal(kw, (C_OUT, C_IN, KH, KW), dtype=jnp.float32) * 0.1

    w_prep = prepare_weight(weight)          # one-time parameter prep
    out = conv_mean(x, w_prep)
    out = jax.block_until_ready(out)

    ref = jax.block_until_ready(reference(x, weight))
    assert out.shape == (N, C_OUT, W_OUT), out.shape
    assert jnp.allclose(out, ref, atol=1e-4, rtol=1e-4), float(jnp.max(jnp.abs(out - ref)))

    print("KERNEL_OK")
</pallas_src>

<mosaic_0001>
module attributes {stable_mosaic.version = 11 : i64} {
  func.func @conv_mean_kernel(%arg0: memref<2x3x16x16xf32, #tpu.memory_space<vmem>>, %arg1: memref<32x27xf32, #tpu.memory_space<vmem>>, %arg2: memref<2x32x14xf32, #tpu.memory_space<vmem>>) attributes {dimension_semantics = [], scalar_prefetch = 0 : i64, scratch_operands = 0 : i64, tpu.core_type = #tpu.core_type<tc>} {
    %c0 = arith.constant 0 : index
    %c0_0 = arith.constant 0 : index
    %c0_1 = arith.constant 0 : index
    %c0_2 = arith.constant 0 : index
    %0 = vector.load %arg0[%c0, %c0_0, %c0_1, %c0_2] : memref<2x3x16x16xf32, #tpu.memory_space<vmem>>, vector<2x3x16x16xf32>
    %c0_3 = arith.constant 0 : index
    %c0_4 = arith.constant 0 : index
    %1 = vector.load %arg1[%c0_3, %c0_4] : memref<32x27xf32, #tpu.memory_space<vmem>>, vector<32x27xf32>
    %cst = arith.constant dense<0.000000e+00> : vector<2x3x16xf32>
    %2 = vector.multi_reduction <add>, %0, %cst [2] : vector<2x3x16x16xf32> to vector<2x3x16xf32>
    %3 = vector.extract_strided_slice %0 {offsets = [0, 0, 0, 0], sizes = [2, 3, 1, 16], strides = [1, 1, 1, 1]} : vector<2x3x16x16xf32> to vector<2x3x1x16xf32>
    %4 = vector.shape_cast %3 : vector<2x3x1x16xf32> to vector<2x3x16xf32>
    %5 = vector.extract_strided_slice %0 {offsets = [0, 0, 1, 0], sizes = [2, 3, 1, 16], strides = [1, 1, 1, 1]} : vector<2x3x16x16xf32> to vector<2x3x1x16xf32>
    %6 = vector.shape_cast %5 : vector<2x3x1x16xf32> to vector<2x3x16xf32>
    %7 = vector.extract_strided_slice %0 {offsets = [0, 0, 14, 0], sizes = [2, 3, 1, 16], strides = [1, 1, 1, 1]} : vector<2x3x16x16xf32> to vector<2x3x1x16xf32>
    %8 = vector.shape_cast %7 : vector<2x3x1x16xf32> to vector<2x3x16xf32>
    %9 = vector.extract_strided_slice %0 {offsets = [0, 0, 15, 0], sizes = [2, 3, 1, 16], strides = [1, 1, 1, 1]} : vector<2x3x16x16xf32> to vector<2x3x1x16xf32>
    %10 = vector.shape_cast %9 : vector<2x3x1x16xf32> to vector<2x3x16xf32>
    %11 = arith.subf %2, %8 : vector<2x3x16xf32>
    %12 = arith.subf %11, %10 : vector<2x3x16xf32>
    %13 = arith.subf %2, %4 : vector<2x3x16xf32>
    %14 = arith.subf %13, %10 : vector<2x3x16xf32>
    %15 = arith.subf %2, %4 : vector<2x3x16xf32>
    %16 = arith.subf %15, %6 : vector<2x3x16xf32>
    %17 = tpu.concatenate %12, %14, %16 in 1 : vector<2x3x16xf32>, vector<2x3x16xf32>, vector<2x3x16xf32> -> vector<2x9x16xf32>
    %18 = vector.extract_strided_slice %17 {offsets = [0, 0, 0], sizes = [2, 9, 14], strides = [1, 1, 1]} : vector<2x9x16xf32> to vector<2x9x14xf32>
    %19 = vector.extract_strided_slice %17 {offsets = [0, 0, 1], sizes = [2, 9, 14], strides = [1, 1, 1]} : vector<2x9x16xf32> to vector<2x9x14xf32>
    %20 = vector.extract_strided_slice %17 {offsets = [0, 0, 2], sizes = [2, 9, 14], strides = [1, 1, 1]} : vector<2x9x16xf32> to vector<2x9x14xf32>
    %21 = tpu.concatenate %18, %19, %20 in 1 : vector<2x9x14xf32>, vector<2x9x14xf32>, vector<2x9x14xf32> -> vector<2x27x14xf32>
    %22 = vector.extract_strided_slice %21 {offsets = [0, 0, 0], sizes = [1, 27, 14], strides = [1, 1, 1]} : vector<2x27x14xf32> to vector<1x27x14xf32>
    %23 = vector.shape_cast %22 : vector<1x27x14xf32> to vector<27x14xf32>
    %cst_5 = arith.constant dense<0.000000e+00> : vector<32x14xf32>
    %24 = tpu.matmul %1, %23, %cst_5 {dimension_numbers = #tpu.dot_dimension_numbers<[1], [0], [0], [1], [0, 0, 1, 1], [], []>} : vector<32x27xf32>, vector<27x14xf32>, vector<32x14xf32> -> vector<32x14xf32>
    %c0_6 = arith.constant 0 : index
    %c0_7 = arith.constant 0 : index
    %c0_8 = arith.constant 0 : index
    %25 = vector.load %arg2[%c0_6, %c0_7, %c0_8] : memref<2x32x14xf32, #tpu.memory_space<vmem>>, vector<1x32x14xf32>
    %26 = vector.shape_cast %25 : vector<1x32x14xf32> to vector<32x14xf32>
    %27 = vector.shape_cast %24 : vector<32x14xf32> to vector<1x32x14xf32>
    tpu.vector_store %arg2[%c0_6, %c0_7, %c0_8], %27 {strides = array<i32>} : memref<2x32x14xf32, #tpu.memory_space<vmem>>, vector<1x32x14xf32>,
    %28 = vector.extract_strided_slice %21 {offsets = [1, 0, 0], sizes = [1, 27, 14], strides = [1, 1, 1]} : vector<2x27x14xf32> to vector<1x27x14xf32>
    %29 = vector.shape_cast %28 : vector<1x27x14xf32> to vector<27x14xf32>
    %cst_9 = arith.constant dense<0.000000e+00> : vector<32x14xf32>
    %30 = tpu.matmul %1, %29, %cst_9 {dimension_numbers = #tpu.dot_dimension_numbers<[1], [0], [0], [1], [0, 0, 1, 1], [], []>} : vector<32x27xf32>, vector<27x14xf32>, vector<32x14xf32> -> vector<32x14xf32>
    %c1 = arith.constant 1 : index
    %c0_10 = arith.constant 0 : index
    %c0_11 = arith.constant 0 : index
    %31 = vector.load %arg2[%c1, %c0_10, %c0_11] : memref<2x32x14xf32, #tpu.memory_space<vmem>>, vector<1x32x14xf32>
    %32 = vector.shape_cast %31 : vector<1x32x14xf32> to vector<32x14xf32>
    %33 = vector.shape_cast %30 : vector<32x14xf32> to vector<1x32x14xf32>
    tpu.vector_store %arg2[%c1, %c0_10, %c0_11], %33 {strides = array<i32>} : memref<2x32x14xf32, #tpu.memory_space<vmem>>, vector<1x32x14xf32>,
    return
  }
}

</mosaic_0001>

<llo_original>
// kernel: tpu_custom_call.1
$region0: #{tpu_custom_call.1}
  #allocation0 [shape = 'u32[]', space=smem, size = 0x4, offset = 0x4, fixed_abs, tag = 'smem constant byte address 0x4 - core index']
  #allocation1 [shape = 'u32[144,128]{1,0:T(1,128)}', space=vmem, size = 0x12000, scoped, tag = 'internal scratch']
  %s0 = inlined_call_operand.hbm [shape: f32[2,3,16,16], index: 0, kind: input, shape index: {}]
  %s1 = inlined_call_operand.hbm [shape: f32[32,27], index: 1, kind: input, shape index: {}]
  %s2 = inlined_call_operand.vmem [shape: f32[2,32,14], index: 2, kind: output, shape index: {}]
  %s3 = sld [smem:[#allocation0]]
  $region26: #{tpu_custom_call.1} parent=0
    _
  %s5 = ssub.s32 1, %s3
  %s6 = scalar_select 0, %s5, %s3
  $region1: #{tpu_custom_call.1} parent=0
    #allocation2 [shape = 'u8[49152]{0}', space=vmem, size = 0xc000, scoped, tag = 'input window, operand 0, single buffered']
    #allocation3 [shape = 's32[1]{0}', space=sflag, size = 0x4, scoped, tag = 'scoped memory for tpu_custom_call.1']
    #allocation4 [shape = 'u8[16384]{0}', space=vmem, size = 0x4000, scoped, tag = 'input window, operand 1, single buffered']
    #allocation5 [shape = 's32[1]{0}', space=sflag, size = 0x4, scoped, tag = 'scoped memory for tpu_custom_call.1']
    %7 = vsyncpa [#allocation3], 0
    %8 = vsyncpa [#allocation5], 0
    // Predicated region
    $region2: #{tpu_custom_call.1} parent=1 // pred_check
      _
    $region3: #{tpu_custom_call.1} parent=1 // pred_check_branch
      %10 = sbr.rel (0) target = $region5
    $region4: #{tpu_custom_call.1} parent=1 // pred_region
      %s12 = ssub.s32 1536, 1536
      %13 = vsyncadd [#allocation3], %s12
      %s14 = sshll.u32 [#allocation2], 4
      %s15 = int_to_ptr.vmem [resolvable:$true] %s14
      %20 = dma.hbm_to_vmem [thread:$0]  %s0, 1536, %s15, [#allocation3], 128, 128, 8
    $region5: #{tpu_custom_call.1} parent=1 // pred_fallthru
      _
    // Predicated region
    $region6: #{tpu_custom_call.1} parent=1 // pred_check
      _
    $region7: #{tpu_custom_call.1} parent=1 // pred_check_branch
      %22 = sbr.rel (0) target = $region9
    $region8: #{tpu_custom_call.1} parent=1 // pred_region
      %s24 = ssub.s32 512, 512
      %25 = vsyncadd [#allocation5], %s24
      %s26 = sshll.u32 [#allocation4], 4
      %s27 = int_to_ptr.vmem [resolvable:$true] %s26
      %32 = dma.hbm_to_vmem [thread:$0]  %s1, 512, %s27, [#allocation5], 128, 128, 8
    $region9: #{tpu_custom_call.1} parent=1 // pred_fallthru
      _
    // Predicated region
    $region10: #{tpu_custom_call.1} parent=1 // pred_check
      _
    $region11: #{tpu_custom_call.1} parent=1 // pred_check_branch
      %34 = sbr.rel (0) target = $region13
    $region12: #{tpu_custom_call.1} parent=1 // pred_region
      %35 = dma.done [#allocation3], 1536
    $region13: #{tpu_custom_call.1} parent=1 // pred_fallthru
      _
    // Predicated region
    $region14: #{tpu_custom_call.1} parent=1 // pred_check
      _
    $region15: #{tpu_custom_call.1} parent=1 // pred_check_branch
      %37 = sbr.rel (0) target = $region17
    $region16: #{tpu_custom_call.1} parent=1 // pred_region
      %38 = dma.done [#allocation5], 512
    $region17: #{tpu_custom_call.1} parent=1 // pred_fallthru
      _
    %v39 = vld [vmem:[#allocation2] sm:$0xff]
    %v40 = vld [vmem:[#allocation2 + $0x8] sm:$0xff]
    %v41 = vld [vmem:[#allocation2 + $0x10] sm:$0xff]
    %v42 = vld [vmem:[#allocation2 + $0x18] sm:$0xff]
    %v43 = vld [vmem:[#allocation2 + $0x20] sm:$0xff]
    %v44 = vld [vmem:[#allocation2 + $0x28] sm:$0xff]
    %v45 = vld [vmem:[#allocation2 + $0x30] sm:$0xff]
    %v46 = vld [vmem:[#allocation2 + $0x38] sm:$0xff]
    %v47 = vld [vmem:[#allocation2 + $0x40] sm:$0xff]
    %v48 = vld [vmem:[#allocation2 + $0x48] sm:$0xff]
    %v49 = vld [vmem:[#allocation2 + $0x50] sm:$0xff]
    %v50 = vld [vmem:[#allocation2 + $0x58] sm:$0xff]
    %v51 = vld [vmem:[#allocation4] sm:$0xff]
    %v52 = vld [vmem:[#allocation4 + $0x8] sm:$0xff]
    %v53 = vld [vmem:[#allocation4 + $0x10] sm:$0xff]
    %v54 = vld [vmem:[#allocation4 + $0x18] sm:$0xff]
    %vm55 = vcmask 130048
    %v56 = vsel %vm55, %v39, 0.0
    %v57 = vsel %vm55, %v40, 0.0
    %v58 = vadd.f32 %v56, %v57
    %v59 = vrot.slane %v58, 4
    %v60 = vadd.f32 %v58, %v59
    %v61 = vrot.slane %v60, 2
    %v62 = vadd.f32 %v60, %v61
    %v63 = vrot.slane %v62, 1
    %v64 = vadd.f32 %v62, %v63
    %v65 = vsel %vm55, %v41, 0.0
    %v66 = vsel %vm55, %v42, 0.0
    %v67 = vadd.f32 %v65, %v66
    %v68 = vrot.slane %v67, 4
    %v69 = vadd.f32 %v67, %v68
    %v70 = vrot.slane %v69, 2
    %v71 = vadd.f32 %v69, %v70
    %v72 = vrot.slane %v71, 1
    %v73 = vadd.f32 %v71, %v72
    %v74 = vsel %vm55, %v43, 0.0
    %v75 = vsel %vm55, %v44, 0.0
    %v76 = vadd.f32 %v74, %v75
    %v77 = vrot.slane %v76, 4
    %v78 = vadd.f32 %v76, %v77
    %v79 = vrot.slane %v78, 2
    %v80 = vadd.f32 %v78, %v79
    %v81 = vrot.slane %v80, 1
    %v82 = vadd.f32 %v80, %v81
    %v83 = vsel %vm55, %v45, 0.0
    %v84 = vsel %vm55, %v46, 0.0
    %v85 = vadd.f32 %v83, %v84
    %v86 = vrot.slane %v85, 4
    %v87 = vadd.f32 %v85, %v86
    %v88 = vrot.slane %v87, 2
    %v89 = vadd.f32 %v87, %v88
    %v90 = vrot.slane %v89, 1
    %v91 = vadd.f32 %v89, %v90
    %v92 = vsel %vm55, %v47, 0.0
    %v93 = vsel %vm55, %v48, 0.0
    %v94 = vadd.f32 %v92, %v93
    %v95 = vrot.slane %v94, 4
    %v96 = vadd.f32 %v94, %v95
    %v97 = vrot.slane %v96, 2
    %v98 = vadd.f32 %v96, %v97
    %v99 = vrot.slane %v98, 1
    %v100 = vadd.f32 %v98, %v99
    %v101 = vsel %vm55, %v49, 0.0
    %v102 = vsel %vm55, %v50, 0.0
    %v103 = vadd.f32 %v101, %v102
    %v104 = vrot.slane %v103, 4
    %v105 = vadd.f32 %v103, %v104
    %v106 = vrot.slane %v105, 2
    %v107 = vadd.f32 %v105, %v106
    %v108 = vrot.slane %v107, 1
    %v109 = vadd.f32 %v107, %v108
    %v110 = vsub.f32 %v64, %v40
    %v111 = vsub.f32 %v73, %v42
    %v112 = vsub.f32 %v82, %v44
    %v113 = vsub.f32 %v91, %v46
    %v114 = vsub.f32 %v100, %v48
    %v115 = vsub.f32 %v109, %v50
    %v122 = vrot.slane %v40, 1
    %v123 = vrot.slane %v42, 1
    %v124 = vrot.slane %v44, 1
    %v125 = vrot.slane %v46, 1
    %v126 = vrot.slane %v48, 1
    %v127 = vrot.slane %v50, 1
    %v134 = vsub.f32 %v110, %v122
    %v135 = vsub.f32 %v111, %v123
    %v136 = vsub.f32 %v112, %v124
    %v137 = vsub.f32 %v113, %v125
    %v138 = vsub.f32 %v114, %v126
    %v139 = vsub.f32 %v115, %v127
    %v140 = vsub.f32 %v64, %v39
    %v141 = vsub.f32 %v73, %v41
    %v142 = vsub.f32 %v82, %v43
    %v143 = vsub.f32 %v91, %v45
    %v144 = vsub.f32 %v100, %v47
    %v145 = vsub.f32 %v109, %v49
    %v146 = vrot.slane %v40, 7
    %v147 = vrot.slane %v42, 7
    %v148 = vrot.slane %v44, 7
    %v149 = vrot.slane %v46, 7
    %v150 = vrot.slane %v48, 7
    %v151 = vrot.slane %v50, 7
    %v158 = vsub.f32 %v140, %v146
    %v159 = vsub.f32 %v141, %v147
    %v160 = vsub.f32 %v142, %v148
    %v161 = vsub.f32 %v143, %v149
    %v162 = vsub.f32 %v144, %v150
    %v163 = vsub.f32 %v145, %v151
    %v170 = vrot.slane %v39, 1
    %v171 = vrot.slane %v41, 1
    %v172 = vrot.slane %v43, 1
    %v173 = vrot.slane %v45, 1
    %v174 = vrot.slane %v47, 1
    %v175 = vrot.slane %v49, 1
    %v182 = vsub.f32 %v140, %v170
    %v183 = vsub.f32 %v141, %v171
    %v184 = vsub.f32 %v142, %v172
    %v185 = vsub.f32 %v143, %v173
    %v186 = vsub.f32 %v144, %v174
    %v187 = vsub.f32 %v145, %v175
    %v194 = vrot.slane %v134, 6
    %v195 = vrot.slane %v135, 5
    %vm196 = vcmask 1041409
    %v197 = vsel %vm196, %v195, %v194
    %v198 = vrot.slane %v136, 4
    %vm199 = vcmask 1042434
    %v200 = vsel %vm199, %v198, %v197
    %v201 = vrot.slane %v137, 6
    %v202 = vrot.slane %v138, 5
    %v203 = vsel %vm196, %v202, %v201
    %v204 = vrot.slane %v139, 4
    %v205 = vsel %vm199, %v204, %v203
    %v214 = vrot.slane %v158, 5
    %v215 = vrot.slane %v159, 4
    %vm216 = vcmask 1044484
    %v217 = vsel %vm216, %v215, %v214
    %v218 = vrot.slane %v160, 3
    %vm219 = vcmask 1045509
    %v220 = vsel %vm219, %v218, %v217
    %v221 = vrot.slane %v161, 5
    %v222 = vrot.slane %v162, 4
    %v223 = vsel %vm216, %v222, %v221
    %v224 = vrot.slane %v163, 3
    %v225 = vsel %vm219, %v224, %v223
    %v234 = vrot.slane %v182, 2
    %v235 = vrot.slane %v183, 1
    %vm236 = vcmask 1047559
    %v237 = vsel %vm236, %v235, %v234
    %v238 = vrot.slane %v185, 2
    %v239 = vrot.slane %v186, 1
    %v240 = vsel %vm236, %v239, %v238
    %vm245 = vcmask 1042432
    %v246 = vsel %vm245, %v200, %v220
    %v247 = vsel %vm245, %v205, %v225
    %vm248 = vcmask 1045504
    %v249 = vsel %vm248, %v246, %v237
    %v250 = vsel %vm248, %v247, %v240
    %vm253 = vcmask 1040384
    %v254 = vrot.slane %v249, 7
    %v255 = vrot.slane %v184, 7
    %v256 = vsel %vm253, %v254, %v255
    %v257 = vrot.slane %v250, 7
    %v258 = vrot.slane %v187, 7
    %v259 = vsel %vm253, %v257, %v258
    %260 = vrot.lane.b32.xlu0 %v254, 127
    %v261 = vpop.permute.xlu0 %260
    %262 = vrot.lane.b32.xlu0 %v256, 127
    %v263 = vpop.permute.xlu0 %262
    %264 = vrot.lane.b32.xlu0 %v257, 127
    %v265 = vpop.permute.xlu0 %264
    %266 = vrot.lane.b32.xlu0 %v259, 127
    %v267 = vpop.permute.xlu0 %266
    %vm272 = vcmask 1041408
    %v273 = vrot.slane %v249, 6
    %v274 = vrot.slane %v184, 6
    %v275 = vsel %vm272, %v273, %v274
    %v276 = vrot.slane %v250, 6
    %v277 = vrot.slane %v187, 6
    %v278 = vsel %vm272, %v276, %v277
    %279 = vrot.lane.b32.xlu0 %v273, 126
    %v280 = vpop.permute.xlu0 %279
    %281 = vrot.lane.b32.xlu0 %v275, 126
    %v282 = vpop.permute.xlu0 %281
    %283 = vrot.lane.b32.xlu0 %v276, 126
    %v284 = vpop.permute.xlu0 %283
    %285 = vrot.lane.b32.xlu0 %v278, 126
    %v286 = vpop.permute.xlu0 %285
    %v289 = vsel %vm253, %v184, %v261
    %v290 = vsel %vm253, %v187, %v265
    %v291 = vsel %vm272, %v263, %v280
    %v292 = vsel %vm272, %v267, %v284
    %vm293 = vcmask 220160
    %v295 = vsel %vm293, %v51, 0
    %v298 = vsel %vm293, %v52, 0
    %v301 = vsel %vm293, %v53, 0
    %v304 = vsel %vm293, %v54, 0
    %v306 = vsel %vm245, %v282, 0
    %308 = vmatprep.subr.mxu0 0.0
    %309 = vmatpush1.msra.mxu0 %v249
    %310 = vmatprep.subr.mxu0 0.0
    %311 = vmatpush1.msra.mxu0 %v289
    %312 = vmatprep.subr.mxu0 0.0
    %313 = vmatpush1.msra.mxu0 %v291
    %314 = vmatprep.subr.mxu0 0.0
    %315 = vmatpush1.msra.mxu0 %v306
    %316 = vmatprep.subr.mxu0 0.0
    %317 = vmatpush1.msra.mxu0 0.0
    %318 = vmatprep.subr.mxu0 0.0
    %319 = vmatpush1.msra.mxu0 0.0
    %320 = vmatprep.subr.mxu0 0.0
    %321 = vmatpush1.msra.mxu0 0.0
    %322 = vmatprep.subr.mxu0 0.0
    %323 = vmatpush1.msra.mxu0 0.0
    %324 = vmatprep.subr.mxu0 0.0
    %325 = vmatpush1.msra.mxu0 0.0
    %326 = vmatprep.subr.mxu0 0.0
    %327 = vmatpush1.msra.mxu0 0.0
    %328 = vmatprep.subr.mxu0 0.0
    %329 = vmatpush1.msra.mxu0 0.0
    %330 = vmatprep.subr.mxu0 0.0
    %331 = vmatpush1.msra.mxu0 0.0
    %332 = vmatprep.subr.mxu0 0.0
    %333 = vmatpush1.msra.mxu0 0.0
    %334 = vmatprep.subr.mxu0 0.0
    %335 = vmatpush1.msra.mxu0 0.0
    %336 = vmatprep.subr.mxu0 0.0
    %337 = vmatpush1.msra.mxu0 0.0
    %338 = vmatprep.subr.mxu0 0.0
    %339 = vmatpush1.msra.mxu0 0.0
    %340 = vmatprep.subr.mxu0 0.0
    %341 = vmatpush1.msra.mxu0 0.0
    %342 = vmatprep.subr.mxu0 0.0
    %343 = vmatpush1.msra.mxu0 0.0
    %344 = vmatprep.subr.mxu0 0.0
    %345 = vmatpush1.msra.mxu0 0.0
    %346 = vmatprep.subr.mxu0 0.0
    %347 = vmatpush1.msra.mxu0 0.0
    %348 = vmatprep.subr.mxu0 0.0
    %349 = vmatpush1.msra.mxu0 0.0
    %350 = vmatprep.subr.mxu0 0.0
    %351 = vmatpush1.msra.mxu0 0.0
    %352 = vmatprep.subr.mxu0 0.0
    %353 = vmatpush1.msra.mxu0 0.0
    %354 = vmatprep.subr.mxu0 0.0
    %355 = vmatpush1.msra.mxu0 0.0
    %356 = vmatprep.subr.mxu0 0.0
    %357 = vmatpush1.msra.mxu0 0.0
    %358 = vmatprep.subr.mxu0 0.0
    %359 = vmatpush1.msra.mxu0 0.0
    %360 = vmatprep.subr.mxu0 0.0
    %361 = vmatpush1.msra.mxu0 0.0
    %362 = vmatprep.subr.mxu0 0.0
    %363 = vmatpush1.msra.mxu0 0.0
    %364 = vmatprep.subr.mxu0 0.0
    %365 = vmatpush1.msra.mxu0 0.0
    %366 = vmatprep.subr.mxu0 0.0
    %367 = vmatpush1.msra.mxu0 0.0
    %368 = vmatprep.subr.mxu0 0.0
    %369 = vmatpush1.msra.mxu0 0.0
    %370 = vmatprep.subr.mxu0 0.0
    %371 = vmatpush1.msra.mxu0 0.0
    %372 = vmatprep.mubr.f32.mxu0 0.0
    %373 = vmatmul.mubr.f32.gmra.mrb[0].mxu0 %v295
    %v374 = vpop.f32.mrb[0].mxu0
    %v375 = vadd.f32 0.0, %v374
    %v376 = vpop.f32.mrb[0].mxu0
    %377 = vmatprep.mubr.f32.mxu0 0.0
    %378 = vmatmul.mubr.f32.gmra.mrb[0].mxu0 %v298
    %v379 = vpop.f32.mrb[0].mxu0
    %v380 = vadd.f32 0.0, %v379
    %v381 = vpop.f32.mrb[0].mxu0
    %382 = vmatprep.mubr.f32.mxu0 0.0
    %383 = vmatmul.mubr.f32.gmra.mrb[0].mxu0 %v301
    %v384 = vpop.f32.mrb[0].mxu0
    %v385 = vadd.f32 0.0, %v384
    %v386 = vpop.f32.mrb[0].mxu0
    %387 = vmatprep.mubr.f32.mxu0 0.0
    %388 = vmatmul.mubr.f32.gmra.mrb[0].mxu0 %v304
    %v389 = vpop.f32.mrb[0].mxu0
    %v390 = vadd.f32 0.0, %v389
    %v391 = vpop.f32.mrb[0].mxu0
    %392 = vdwg.mxu0
    %vm393 = vcmask 113664
    %394 = vst.msk [vmem:[%s2] sm:$0xff] %vm393, %v375
    %395 = vst.msk [vmem:[%s2 + $0x8] sm:$0xff] %vm393, %v380
    %396 = vst.msk [vmem:[%s2 + $0x10] sm:$0xff] %vm393, %v385
    %397 = vst.msk [vmem:[%s2 + $0x18] sm:$0xff] %vm393, %v390
    %v398 = vsel %vm245, %v286, 0
    %400 = vmatprep.subr.mxu0 0.0
    %401 = vmatpush1.msra.mxu0 %v250
    %402 = vmatprep.subr.mxu0 0.0
    %403 = vmatpush1.msra.mxu0 %v290
    %404 = vmatprep.subr.mxu0 0.0
    %405 = vmatpush1.msra.mxu0 %v292
    %406 = vmatprep.subr.mxu0 0.0
    %407 = vmatpush1.msra.mxu0 %v398
    %408 = vmatprep.subr.mxu0 0.0
    %409 = vmatpush1.msra.mxu0 0.0
    %410 = vmatprep.subr.mxu0 0.0
    %411 = vmatpush1.msra.mxu0 0.0
    %412 = vmatprep.subr.mxu0 0.0
    %413 = vmatpush1.msra.mxu0 0.0
    %414 = vmatprep.subr.mxu0 0.0
    %415 = vmatpush1.msra.mxu0 0.0
    %416 = vmatprep.subr.mxu0 0.0
    %417 = vmatpush1.msra.mxu0 0.0
    %418 = vmatprep.subr.mxu0 0.0
    %419 = vmatpush1.msra.mxu0 0.0
    %420 = vmatprep.subr.mxu0 0.0
    %421 = vmatpush1.msra.mxu0 0.0
    %422 = vmatprep.subr.mxu0 0.0
    %423 = vmatpush1.msra.mxu0 0.0
    %424 = vmatprep.subr.mxu0 0.0
    %425 = vmatpush1.msra.mxu0 0.0
    %426 = vmatprep.subr.mxu0 0.0
    %427 = vmatpush1.msra.mxu0 0.0
    %428 = vmatprep.subr.mxu0 0.0
    %429 = vmatpush1.msra.mxu0 0.0
    %430 = vmatprep.subr.mxu0 0.0
    %431 = vmatpush1.msra.mxu0 0.0
    %432 = vmatprep.subr.mxu0 0.0
    %433 = vmatpush1.msra.mxu0 0.0
    %434 = vmatprep.subr.mxu0 0.0
    %435 = vmatpush1.msra.mxu0 0.0
    %436 = vmatprep.subr.mxu0 0.0
    %437 = vmatpush1.msra.mxu0 0.0
    %438 = vmatprep.subr.mxu0 0.0
    %439 = vmatpush1.msra.mxu0 0.0
    %440 = vmatprep.subr.mxu0 0.0
    %441 = vmatpush1.msra.mxu0 0.0
    %442 = vmatprep.subr.mxu0 0.0
    %443 = vmatpush1.msra.mxu0 0.0
    %444 = vmatprep.subr.mxu0 0.0
    %445 = vmatpush1.msra.mxu0 0.0
    %446 = vmatprep.subr.mxu0 0.0
    %447 = vmatpush1.msra.mxu0 0.0
    %448 = vmatprep.subr.mxu0 0.0
    %449 = vmatpush1.msra.mxu0 0.0
    %450 = vmatprep.subr.mxu0 0.0
    %451 = vmatpush1.msra.mxu0 0.0
    %452 = vmatprep.subr.mxu0 0.0
    %453 = vmatpush1.msra.mxu0 0.0
    %454 = vmatprep.subr.mxu0 0.0
    %455 = vmatpush1.msra.mxu0 0.0
    %456 = vmatprep.subr.mxu0 0.0
    %457 = vmatpush1.msra.mxu0 0.0
    %458 = vmatprep.subr.mxu0 0.0
    %459 = vmatpush1.msra.mxu0 0.0
    %460 = vmatprep.subr.mxu0 0.0
    %461 = vmatpush1.msra.mxu0 0.0
    %462 = vmatprep.subr.mxu0 0.0
    %463 = vmatpush1.msra.mxu0 0.0
    %464 = vmatprep.mubr.f32.mxu0 0.0
    %465 = vmatmul.mubr.f32.gmra.mrb[0].mxu0 %v295
    %v466 = vpop.f32.mrb[0].mxu0
    %v467 = vadd.f32 0.0, %v466
    %v468 = vpop.f32.mrb[0].mxu0
    %469 = vmatprep.mubr.f32.mxu0 0.0
    %470 = vmatmul.mubr.f32.gmra.mrb[0].mxu0 %v298
    %v471 = vpop.f32.mrb[0].mxu0
    %v472 = vadd.f32 0.0, %v471
    %v473 = vpop.f32.mrb[0].mxu0
    %474 = vmatprep.mubr.f32.mxu0 0.0
    %475 = vmatmul.mubr.f32.gmra.mrb[0].mxu0 %v301
    %v476 = vpop.f32.mrb[0].mxu0
    %v477 = vadd.f32 0.0, %v476
    %v478 = vpop.f32.mrb[0].mxu0
    %479 = vmatprep.mubr.f32.mxu0 0.0
    %480 = vmatmul.mubr.f32.gmra.mrb[0].mxu0 %v304
    %v481 = vpop.f32.mrb[0].mxu0
    %v482 = vadd.f32 0.0, %v481
    %v483 = vpop.f32.mrb[0].mxu0
    %484 = vdwg.mxu0
    %s485 = scalar_lea.vmem %s2, 32
    %486 = vst.msk [vmem:[%s485] sm:$0xff] %vm393, %v467
    %487 = vst.msk [vmem:[%s485 + $0x8] sm:$0xff] %vm393, %v472
    %488 = vst.msk [vmem:[%s485 + $0x10] sm:$0xff] %vm393, %v477
    %489 = vst.msk [vmem:[%s485 + $0x18] sm:$0xff] %vm393, %v482
    // Predicated region
    $region18: #{tpu_custom_call.1} parent=1 // pred_check
      _
    $region19: #{tpu_custom_call.1} parent=1 // pred_check_branch
      %491 = sbr.rel (0) target = $region21
    $region20: #{tpu_custom_call.1} parent=1 // pred_region
      _
    $region21: #{tpu_custom_call.1} parent=1 // pred_fallthru
      _
    // Predicated region
    $region22: #{tpu_custom_call.1} parent=1 // pred_check
      _
    $region23: #{tpu_custom_call.1} parent=1 // pred_check_branch
      %493 = sbr.rel (0) target = $region25
    $region24: #{tpu_custom_call.1} parent=1 // pred_region
      _
    $region25: #{tpu_custom_call.1} parent=1 // pred_fallthru
      _
    %494 = vsyncpa [#allocation3], 1
    %495 = vsyncpa [#allocation5], 1

</llo_original>
